<compile_context>
chip_gen: v7x
topology: tpu7x:2x2x1
jax: 0.10.0
libtpu: 0.0.40
codegen_flags: <defaults>
</compile_context>

<pallas_src>
import functools

import jax
import jax.numpy as jnp
from jax.experimental import pallas as pl
from jax.experimental.pallas import tpu as pltpu


def _pool_kernel(x_ref, sum_ref, max_ref, *, hw, t_hw, needs_mask):
    """Running (sum, max) reduction over the flattened spatial (lane) axis.

    x_ref   : (B, Cblk, t_hw)  current spatial tile, input dtype (f32/bf16)
    sum_ref : (B, Cblk) f32    output tile == running-sum accumulator
    max_ref : (B, Cblk) f32    output tile == running-max accumulator
    """
    k = pl.program_id(1)
    last = pl.num_programs(1) - 1

    @pl.when(k == 0)
    def _init():
        sum_ref[...] = jnp.zeros_like(sum_ref)
        max_ref[...] = jnp.full_like(max_ref, -jnp.inf)

    x = x_ref[...]                                        # stays in input dtype

    def _accumulate(x_sum, x_max):
        # Sum accumulates in f32; max folds in the input dtype (exact) and only
        # the tiny (B, Cblk) folded result is upcast.
        sum_ref[...] += jnp.sum(x_sum, axis=-1, dtype=jnp.float32)
        max_ref[...] = jnp.maximum(max_ref[...],
                                   jnp.max(x_max, axis=-1).astype(jnp.float32))

    if needs_mask:
        # Only the final tile overhangs H*W: keep the hot path free of
        # per-element iota / compare / select work.
        @pl.when(k != last)
        def _fast():
            _accumulate(x, x)

        @pl.when(k == last)
        def _masked():
            col = k * t_hw + jax.lax.broadcasted_iota(jnp.int32, x.shape, 2)
            valid = col < hw
            zero = jnp.zeros((), dtype=x.dtype)
            ninf = jnp.array(-jnp.inf, dtype=x.dtype)
            _accumulate(jnp.where(valid, x, zero), jnp.where(valid, x, ninf))
    else:
        _accumulate(x, x)


def _mlp_kernel(sum_ref, max_ref, w1t_ref, w2t_ref, o_ref, *, inv_hw):
    """Tiny epilogue: avg-scale, fc1, ReLU, merged fc2, sigmoid."""
    avg = sum_ref[...] * inv_hw                           # mean applied once
    mx = max_ref[...]
    w1t = w1t_ref[...]                                    # (C, Ch)
    w2t = w2t_ref[...]                                    # (Ch, C)
    h = (jnp.maximum(jnp.dot(avg, w1t, preferred_element_type=jnp.float32), 0.0)
         + jnp.maximum(jnp.dot(mx, w1t, preferred_element_type=jnp.float32), 0.0))
    o_ref[...] = jax.nn.sigmoid(jnp.dot(h, w2t, preferred_element_type=jnp.float32))


def _vmem_budgets():
    """Generation-aware (double-buffered input window, vmem_limit) in bytes."""
    try:
        info = pltpu.get_tpu_info()
        vmem_phys = int(getattr(info, "vmem_capacity_bytes", 64 * 1024 * 1024))
    except Exception:
        vmem_phys = 64 * 1024 * 1024                      # assume smallest (v7x TC)
    # 128 MiB parts (v5e/v6e): 96 MiB limit / 48 MiB window.
    # 64 MiB parts (v7x per-TC): 48 MiB limit / 24 MiB window.
    limit = min((vmem_phys * 3) // 4, 96 * 1024 * 1024)
    window = limit // 2
    return window, limit


def _pick_channel_block(c):
    # Pooled-output blocks want Cblk % 128 == 0 (lane-dense) or Cblk == C; a
    # split C axis also provides the "parallel" axis for v7x megacore sharding.
    if c % 128 == 0 and c >= 256:
        return 128
    return c


def _pick_spatial_tile(hw, rows, itemsize, window_bytes):
    """Largest lane tile (multiple of 128) whose double-buffered input window
    fits the budget; small spatial maps use a single full-width block."""
    per_lane = 2 * rows * itemsize                        # 2x: double buffering
    max_lanes = max(window_bytes // max(per_lane, 1), 128)
    if hw <= max_lanes:
        return hw
    return max((max_lanes // 128) * 128, 128)


def channel_attention(x, w_fc1, w_fc2, *, spatial_tile=None):
    """x: (B, C, H, W); w_fc1: (C//ratio, C); w_fc2: (C, C//ratio).

    Returns the sigmoid channel-attention map of shape (B, C, 1, 1), matching
    the PyTorch ChannelAttention forward.  x may be float32 or bfloat16
    (bf16 halves HBM traffic; accumulation is f32 either way).  The merged-fc2
    formulation requires fc2 to be bias-free, as in the reference module.
    """
    B, C, H, W = x.shape
    Ch = w_fc1.shape[0]
    assert w_fc1.shape == (Ch, C) and w_fc2.shape == (C, Ch)
    HW = H * W

    x_flat = x.reshape(B, C, HW)                          # contiguous, free
    itemsize = x_flat.dtype.itemsize

    c_blk = _pick_channel_block(C)
    window, vmem_limit = _vmem_budgets()

    if spatial_tile is None:
        t_hw = _pick_spatial_tile(HW, B * c_blk, itemsize, window)
    else:
        t_hw = min(int(spatial_tile), HW)
        assert t_hw == HW or t_hw % 128 == 0, (
            "spatial_tile must equal H*W or be a multiple of 128 "
            f"(got {spatial_tile} for H*W={HW})")
    num_k = pl.cdiv(HW, t_hw)
    needs_mask = (HW % t_hw) != 0

    pool_kernel = functools.partial(
        _pool_kernel, hw=HW, t_hw=t_hw, needs_mask=needs_mask)

    cost = pl.CostEstimate(
        flops=2 * B * C * HW,
        transcendentals=0,
        bytes_accessed=x_flat.size * itemsize + 2 * B * C * 4,
    )

    pooled_sum, pooled_max = pl.pallas_call(
        pool_kernel,
        out_shape=(jax.ShapeDtypeStruct((B, C), jnp.float32),
                   jax.ShapeDtypeStruct((B, C), jnp.float32)),
        grid_spec=pltpu.PrefetchScalarGridSpec(
            num_scalar_prefetch=0,
            grid=(C // c_blk, num_k),
            in_specs=[pl.BlockSpec((B, c_blk, t_hw), lambda c, k: (0, c, k))],
            out_specs=[pl.BlockSpec((B, c_blk), lambda c, k: (0, c)),
                       pl.BlockSpec((B, c_blk), lambda c, k: (0, c))],
        ),
        compiler_params=pltpu.CompilerParams(
            dimension_semantics=("parallel", "arbitrary"),
            vmem_limit_bytes=vmem_limit,
        ),
        cost_estimate=cost,
    )(x_flat)

    # Tiny epilogue kernel on the pooled (B, C) vectors (a few hundred FLOPs).
    w1t = jnp.asarray(w_fc1, jnp.float32).T               # (C, Ch)
    w2t = jnp.asarray(w_fc2, jnp.float32).T               # (Ch, C)
    mlp_kernel = functools.partial(_mlp_kernel, inv_hw=1.0 / HW)
    attn = pl.pallas_call(
        mlp_kernel,
        out_shape=jax.ShapeDtypeStruct((B, C), jnp.float32),
        in_specs=[pl.BlockSpec(memory_space=pltpu.MemorySpace.VMEM)] * 4,
        out_specs=pl.BlockSpec(memory_space=pltpu.MemorySpace.VMEM),
    )(pooled_sum, pooled_max, w1t, w2t)

    return attn.reshape(B, C, 1, 1)


def _reference(x, w_fc1, w_fc2):
    # Pure-JAX reference matching the PyTorch forward (f32 math).
    xf = x.astype(jnp.float32)
    avg = jnp.mean(xf, axis=(2, 3))                       # (B, C)
    mx = jnp.max(xf, axis=(2, 3))                         # (B, C)

    def branch(p):
        return jnp.maximum(p @ w_fc1.T, 0.0) @ w_fc2.T

    return jax.nn.sigmoid(branch(avg) + branch(mx))[:, :, None, None]


if __name__ == "__main__":
    key = jax.random.PRNGKey(0)
    kw, kx = jax.random.split(key)

    def make_weights(k, C, ratio=8):
        Ch = C // ratio
        k1, k2 = jax.random.split(k)
        w1 = jax.random.normal(k1, (Ch, C), jnp.float32) * (1.0 / (C ** 0.5))
        w2 = jax.random.normal(k2, (C, Ch), jnp.float32) * (1.0 / (Ch ** 0.5))
        return w1, w2

    # (B, C, H, W, dtype, spatial_tile) — exercises single-block, even multi-
    # tile, masked-remainder, bf16, and multi-C-block ("parallel" axis) paths.
    configs = [
        (2, 32, 16, 16, jnp.float32, None),    # HW=256 -> single full block
        (2, 32, 16, 16, jnp.float32, 128),     # 2 even spatial tiles
        (2, 32, 24, 24, jnp.float32, 256),     # remainder-masked last tile
        (2, 32, 24, 24, jnp.bfloat16, 128),    # bf16 activations + mask
        (2, 256, 16, 16, jnp.float32, None),   # C split into 128-channel blocks
    ]
    for idx, (B, C, H, W, dtype, tile) in enumerate(configs):
        w_fc1, w_fc2 = make_weights(jax.random.fold_in(kw, C), C)
        x = jax.random.normal(jax.random.fold_in(kx, idx),
                              (B, C, H, W), jnp.float32).astype(dtype)
        out = jax.block_until_ready(
            channel_attention(x, w_fc1, w_fc2, spatial_tile=tile))
        ref = _reference(x, w_fc1, w_fc2)
        assert out.shape == (B, C, 1, 1)
        tol = 1e-5 if dtype == jnp.float32 else 1e-4
        assert jnp.allclose(out, ref, atol=tol, rtol=tol), (
            f"mismatch vs reference for config {(B, C, H, W, dtype, tile)}")

    print("KERNEL_OK")
</pallas_src>

<mosaic_0001>
module attributes {stable_mosaic.version = 11 : i64} {
  func.func @_pool_kernel(%arg0: i32, %arg1: i32, %arg2: memref<2x32x256xf32, #tpu.memory_space<vmem>>, %arg3: memref<2x32xf32, #tpu.memory_space<vmem>>, %arg4: memref<2x32xf32, #tpu.memory_space<vmem>>) attributes {dimension_semantics = [#tpu.dimension_semantics<parallel>, #tpu.dimension_semantics<arbitrary>], iteration_bounds = array<i64: 1, 1>, scalar_prefetch = 0 : i64, scratch_operands = 0 : i64, tpu.core_type = #tpu.core_type<tc>, window_params = [{transform_indices = @transform_0, window_bounds = array<i64: 2, 32, 256>}, {transform_indices = @transform_1, window_bounds = array<i64: 2, 32>}, {transform_indices = @transform_2, window_bounds = array<i64: 2, 32>}]} {
    %c0_i32 = arith.constant 0 : i32
    %0 = arith.cmpi eq, %arg1, %c0_i32 : i32
    %1 = arith.extui %0 : i1 to i32
    %c0_i32_0 = arith.constant 0 : i32
    %2 = arith.cmpi ne, %1, %c0_i32_0 : i32
    scf.if %2 {
      %cst_12 = arith.constant 0.000000e+00 : f32
      %12 = vector.broadcast %cst_12 : f32 to vector<2x32xf32>
      %c0_13 = arith.constant 0 : index
      %c0_14 = arith.constant 0 : index
      %13 = vector.load %arg3[%c0_13, %c0_14] : memref<2x32xf32, #tpu.memory_space<vmem>>, vector<2x32xf32>
      tpu.vector_store %arg3[%c0_13, %c0_14], %12 {strides = array<i32>} : memref<2x32xf32, #tpu.memory_space<vmem>>, vector<2x32xf32>,
      %cst_15 = arith.constant 0xFF800000 : f32
      %14 = vector.broadcast %cst_15 : f32 to vector<2x32xf32>
      %c0_16 = arith.constant 0 : index
      %c0_17 = arith.constant 0 : index
      %15 = vector.load %arg4[%c0_16, %c0_17] : memref<2x32xf32, #tpu.memory_space<vmem>>, vector<2x32xf32>
      tpu.vector_store %arg4[%c0_16, %c0_17], %14 {strides = array<i32>} : memref<2x32xf32, #tpu.memory_space<vmem>>, vector<2x32xf32>,
    } else {
    }
    %c0 = arith.constant 0 : index
    %c0_1 = arith.constant 0 : index
    %c0_2 = arith.constant 0 : index
    %3 = vector.load %arg2[%c0, %c0_1, %c0_2] : memref<2x32x256xf32, #tpu.memory_space<vmem>>, vector<2x32x256xf32>
    %c0_3 = arith.constant 0 : index
    %c0_4 = arith.constant 0 : index
    %4 = vector.load %arg3[%c0_3, %c0_4] : memref<2x32xf32, #tpu.memory_space<vmem>>, vector<2x32xf32>
    %cst = arith.constant dense<0.000000e+00> : vector<2x32xf32>
    %5 = vector.multi_reduction <add>, %3, %cst [2] : vector<2x32x256xf32> to vector<2x32xf32>
    %6 = arith.addf %4, %5 : vector<2x32xf32>
    %c0_5 = arith.constant 0 : index
    %c0_6 = arith.constant 0 : index
    %7 = vector.load %arg3[%c0_5, %c0_6] : memref<2x32xf32, #tpu.memory_space<vmem>>, vector<2x32xf32>
    tpu.vector_store %arg3[%c0_5, %c0_6], %6 {strides = array<i32>} : memref<2x32xf32, #tpu.memory_space<vmem>>, vector<2x32xf32>,
    %c0_7 = arith.constant 0 : index
    %c0_8 = arith.constant 0 : index
    %8 = vector.load %arg4[%c0_7, %c0_8] : memref<2x32xf32, #tpu.memory_space<vmem>>, vector<2x32xf32>
    %cst_9 = arith.constant dense<0xFF800000> : vector<2x32xf32>
    %9 = vector.multi_reduction <maximumf>, %3, %cst_9 [2] : vector<2x32x256xf32> to vector<2x32xf32>
    %10 = arith.maximumf %8, %9 : vector<2x32xf32>
    %c0_10 = arith.constant 0 : index
    %c0_11 = arith.constant 0 : index
    %11 = vector.load %arg4[%c0_10, %c0_11] : memref<2x32xf32, #tpu.memory_space<vmem>>, vector<2x32xf32>
    tpu.vector_store %arg4[%c0_10, %c0_11], %10 {strides = array<i32>} : memref<2x32xf32, #tpu.memory_space<vmem>>, vector<2x32xf32>,
    return
  }
  func.func @transform_0(%arg0: i32, %arg1: i32) -> (i32, i32, i32) {
    %c0_i32 = arith.constant 0 : i32
    %c0_i32_0 = arith.constant 0 : i32
    return %c0_i32, %arg0, %arg1 : i32, i32, i32
  }
  func.func @transform_1(%arg0: i32, %arg1: i32) -> (i32, i32) {
    %c0_i32 = arith.constant 0 : i32
    %c0_i32_0 = arith.constant 0 : i32
    return %c0_i32, %arg0 : i32, i32
  }
  func.func @transform_2(%arg0: i32, %arg1: i32) -> (i32, i32) {
    %c0_i32 = arith.constant 0 : i32
    %c0_i32_0 = arith.constant 0 : i32
    return %c0_i32, %arg0 : i32, i32
  }
}

</mosaic_0001>

<llo_original>
// kernel: tpu_custom_call.1
$region0: #{tpu_custom_call.1}
  #allocation0 [shape = 'u32[]', space=smem, size = 0x4, offset = 0x4, fixed_abs, tag = 'smem constant byte address 0x4 - core index']
  #allocation1 [shape = 'u32[144,128]{1,0:T(1,128)}', space=vmem, size = 0x12000, scoped, tag = 'internal scratch']
  %s0 = inlined_call_operand.hbm [shape: f32[2,32,256], index: 0, kind: input, shape index: {}]
  %s1 = inlined_call_operand.hbm [shape: f32[2,32], index: 1, kind: output, shape index: {0}]
  %s2 = inlined_call_operand.hbm [shape: f32[2,32], index: 2, kind: output, shape index: {1}]
  %3 = xla_tuple %s1, %s2
  %s4 = sld [smem:[#allocation0]]
  $region30: #{tpu_custom_call.1} parent=0
    _
  %s6 = ssub.s32 1, %s4
  %s7 = scalar_select 0, %s6, %s4
  $region1: #{tpu_custom_call.1} parent=0
    #allocation2 [shape = 'u8[65536]{0}', space=vmem, size = 0x10000, scoped, tag = 'input window, operand 0, single buffered']
    #allocation3 [shape = 's32[1]{0}', space=sflag, size = 0x4, scoped, tag = 'scoped memory for tpu_custom_call.1']
    #allocation4 [shape = 's32[1]{0}', space=sflag, size = 0x4, scoped, tag = 'scoped memory for tpu_custom_call.1']
    #allocation5 [shape = 'u8[1024]{0}', space=vmem, size = 0x400, scoped, tag = 'output window, operand 0, single buffered']
    #allocation6 [shape = 'u8[1024]{0}', space=vmem, size = 0x400, scoped, tag = 'output window, operand 1, single buffered']
    #allocation7 [shape = 's32[1]{0}', space=sflag, size = 0x4, scoped, tag = 'scoped memory for tpu_custom_call.1']
    %8 = vsyncpa [#allocation3], 0
    %9 = vsyncpa [#allocation4], 0
    %10 = vsyncpa [#allocation7], 0
    // Predicated region
    $region2: #{tpu_custom_call.1} parent=1 // pred_check
      _
    $region3: #{tpu_custom_call.1} parent=1 // pred_check_branch
      %12 = sbr.rel (0) target = $region5
    $region4: #{tpu_custom_call.1} parent=1 // pred_region
      %s14 = ssub.s32 2048, 2048
      %15 = vsyncadd [#allocation3], %s14
      %s16 = sshll.u32 [#allocation2], 4
      %s17 = int_to_ptr.vmem [resolvable:$true] %s16
      %22 = dma.hbm_to_vmem [thread:$0]  %s0, 2048, %s17, [#allocation3], 256, 256, 16
    $region5: #{tpu_custom_call.1} parent=1 // pred_fallthru
      _
    // Predicated region
    $region6: #{tpu_custom_call.1} parent=1 // pred_check
      _
    $region7: #{tpu_custom_call.1} parent=1 // pred_check_branch
      %24 = sbr.rel (0) target = $region9
    $region8: #{tpu_custom_call.1} parent=1 // pred_region
      %25 = dma.done [#allocation3], 2048
    $region9: #{tpu_custom_call.1} parent=1 // pred_fallthru
      _
    %p26 = scmp.eq.s32.totalorder 0, 0
    // Predicated region
    $region10: #{tpu_custom_call.1} parent=1 // pred_check
      %p27 = pneg %p26
    $region11: #{tpu_custom_call.1} parent=1 // pred_check_branch
      %29 = sbr.rel (%p27) target = $region13
    $region12: #{tpu_custom_call.1} parent=1 // pred_region
      %vm30 = vcmask 254976
      %31 = vst.msk [vmem:[#allocation5] sm:$0x3] %vm30, 0.0
      %32 = vst.msk [vmem:[#allocation6] sm:$0x3] %vm30, -inf
    $region13: #{tpu_custom_call.1} parent=1 // pred_fallthru
      _
    %v33 = vld [vmem:[#allocation2] sm:$0xff]
    %v34 = vld [vmem:[#allocation2 + $0x8] sm:$0xff]
    %v35 = vld [vmem:[#allocation2 + $0x10] sm:$0xff]
    %v36 = vld [vmem:[#allocation2 + $0x18] sm:$0xff]
    %v37 = vld [vmem:[#allocation2 + $0x20] sm:$0xff]
    %v38 = vld [vmem:[#allocation2 + $0x28] sm:$0xff]
    %v39 = vld [vmem:[#allocation2 + $0x30] sm:$0xff]
    %v40 = vld [vmem:[#allocation2 + $0x38] sm:$0xff]
    %v41 = vld [vmem:[#allocation2 + $0x40] sm:$0xff]
    %v42 = vld [vmem:[#allocation2 + $0x48] sm:$0xff]
    %v43 = vld [vmem:[#allocation2 + $0x50] sm:$0xff]
    %v44 = vld [vmem:[#allocation2 + $0x58] sm:$0xff]
    %v45 = vld [vmem:[#allocation2 + $0x60] sm:$0xff]
    %v46 = vld [vmem:[#allocation2 + $0x68] sm:$0xff]
    %v47 = vld [vmem:[#allocation2 + $0x70] sm:$0xff]
    %v48 = vld [vmem:[#allocation2 + $0x78] sm:$0xff]
    %v49 = vld [vmem:[#allocation5] sm:$0x3]
    %v50 = vadd.f32 %v33, %v34
    %51 = vadd.xlane.f32.xlu0 %v50
    %v52 = vpop.xlane.xlu0 %51
    %v53 = vadd.f32 %v35, %v36
    %54 = vadd.xlane.f32.xlu0 %v53
    %v55 = vpop.xlane.xlu0 %54
    %v56 = vadd.f32 %v37, %v38
    %57 = vadd.xlane.f32.xlu0 %v56
    %v58 = vpop.xlane.xlu0 %57
    %v59 = vadd.f32 %v39, %v40
    %60 = vadd.xlane.f32.xlu0 %v59
    %v61 = vpop.xlane.xlu0 %60
    %v62 = vadd.f32 %v41, %v42
    %63 = vadd.xlane.f32.xlu0 %v62
    %v64 = vpop.xlane.xlu0 %63
    %v65 = vadd.f32 %v43, %v44
    %66 = vadd.xlane.f32.xlu0 %v65
    %v67 = vpop.xlane.xlu0 %66
    %v68 = vadd.f32 %v45, %v46
    %69 = vadd.xlane.f32.xlu0 %v68
    %v70 = vpop.xlane.xlu0 %69
    %v71 = vadd.f32 %v47, %v48
    %72 = vadd.xlane.f32.xlu0 %v71
    %v73 = vpop.xlane.xlu0 %72
    %v82 = vlaneseq
    %v83 = vand.u32 %v82, 127
    %v84 = vlaneseq
    %v85 = vshrl.u32 %v84, 7
    %v86 = vsub.s32 %v83, %v85
    %v87 = vrot.slane %v52, %v86
    %v88 = vadd.s32 %v83, 4294967288
    %v89 = vlaneseq
    %v90 = vshrl.u32 %v89, 7
    %v91 = vsub.s32 %v88, %v90
    %v92 = vrot.slane %v55, %v91
    %vm93 = vcmask 130112
    %v94 = vsel %vm93, %v92, %v87
    %v95 = vadd.s32 %v83, 4294967280
    %v96 = vlaneseq
    %v97 = vshrl.u32 %v96, 7
    %v98 = vsub.s32 %v95, %v97
    %v99 = vrot.slane %v58, %v98
    %vm100 = vcmask 195712
    %v101 = vsel %vm100, %v99, %v94
    %v102 = vadd.s32 %v83, 4294967272
    %v103 = vlaneseq
    %v104 = vshrl.u32 %v103, 7
    %v105 = vsub.s32 %v102, %v104
    %v106 = vrot.slane %v61, %v105
    %vm107 = vcmask 261312
    %v108 = vsel %vm107, %v106, %v101
    %v109 = vlaneseq
    %v110 = vshrl.u32 %v109, 7
    %v111 = vsub.s32 %v83, %v110
    %v112 = vrot.slane %v64, %v111
    %v113 = vlaneseq
    %v114 = vshrl.u32 %v113, 7
    %v115 = vsub.s32 %v88, %v114
    %v116 = vrot.slane %v67, %v115
    %v117 = vsel %vm93, %v116, %v112
    %v118 = vlaneseq
    %v119 = vshrl.u32 %v118, 7
    %v120 = vsub.s32 %v95, %v119
    %v121 = vrot.slane %v70, %v120
    %v122 = vsel %vm100, %v121, %v117
    %v123 = vlaneseq
    %v124 = vshrl.u32 %v123, 7
    %v125 = vsub.s32 %v102, %v124
    %v126 = vrot.slane %v73, %v125
    %v127 = vsel %vm107, %v126, %v122
    %vm128 = vcmask 1041409
    %v129 = vsel %vm128, %v127, %v108
    %v131 = vadd.f32 %v49, %v129
    %vm132 = vcmask 254976
    %133 = vst.msk [vmem:[#allocation5] sm:$0x3] %vm132, %v131
    %v134 = vld [vmem:[#allocation6] sm:$0x3]
    %v135 = vmax.f32 %v33, %v34
    %136 = vmax.xlane.f32.xlu0 %v135
    %v137 = vpop.xlane.xlu0 %136
    %v138 = vmax.f32 %v35, %v36
    %139 = vmax.xlane.f32.xlu0 %v138
    %v140 = vpop.xlane.xlu0 %139
    %v141 = vmax.f32 %v37, %v38
    %142 = vmax.xlane.f32.xlu0 %v141
    %v143 = vpop.xlane.xlu0 %142
    %v144 = vmax.f32 %v39, %v40
    %145 = vmax.xlane.f32.xlu0 %v144
    %v146 = vpop.xlane.xlu0 %145
    %v147 = vmax.f32 %v41, %v42
    %148 = vmax.xlane.f32.xlu0 %v147
    %v149 = vpop.xlane.xlu0 %148
    %v150 = vmax.f32 %v43, %v44
    %151 = vmax.xlane.f32.xlu0 %v150
    %v152 = vpop.xlane.xlu0 %151
    %v153 = vmax.f32 %v45, %v46
    %154 = vmax.xlane.f32.xlu0 %v153
    %v155 = vpop.xlane.xlu0 %154
    %v156 = vmax.f32 %v47, %v48
    %157 = vmax.xlane.f32.xlu0 %v156
    %v158 = vpop.xlane.xlu0 %157
    %v167 = vlaneseq
    %v168 = vshrl.u32 %v167, 7
    %v169 = vsub.s32 %v83, %v168
    %v170 = vrot.slane %v137, %v169
    %v171 = vlaneseq
    %v172 = vshrl.u32 %v171, 7
    %v173 = vsub.s32 %v88, %v172
    %v174 = vrot.slane %v140, %v173
    %v175 = vsel %vm93, %v174, %v170
    %v176 = vlaneseq
    %v177 = vshrl.u32 %v176, 7
    %v178 = vsub.s32 %v95, %v177
    %v179 = vrot.slane %v143, %v178
    %v180 = vsel %vm100, %v179, %v175
    %v181 = vlaneseq
    %v182 = vshrl.u32 %v181, 7
    %v183 = vsub.s32 %v102, %v182
    %v184 = vrot.slane %v146, %v183
    %v185 = vsel %vm107, %v184, %v180
    %v186 = vlaneseq
    %v187 = vshrl.u32 %v186, 7
    %v188 = vsub.s32 %v83, %v187
    %v189 = vrot.slane %v149, %v188
    %v190 = vlaneseq
    %v191 = vshrl.u32 %v190, 7
    %v192 = vsub.s32 %v88, %v191
    %v193 = vrot.slane %v152, %v192
    %v194 = vsel %vm93, %v193, %v189
    %v195 = vlaneseq
    %v196 = vshrl.u32 %v195, 7
    %v197 = vsub.s32 %v95, %v196
    %v198 = vrot.slane %v155, %v197
    %v199 = vsel %vm100, %v198, %v194
    %v200 = vlaneseq
    %v201 = vshrl.u32 %v200, 7
    %v202 = vsub.s32 %v102, %v201
    %v203 = vrot.slane %v158, %v202
    %v204 = vsel %vm107, %v203, %v199
    %v205 = vsel %vm128, %v204, %v185
    %v207 = vmax.f32 %v134, %v205
    %208 = vst.msk [vmem:[#allocation6] sm:$0x3] %vm132, %v207
    // Predicated region
    $region14: #{tpu_custom_call.1} parent=1 // pred_check
      _
    $region15: #{tpu_custom_call.1} parent=1 // pred_check_branch
      %210 = sbr.rel (0) target = $region17
    $region16: #{tpu_custom_call.1} parent=1 // pred_region
      %s212 = ssub.s32 32, 32
      %213 = vsyncadd [#allocation4], %s212
      %s215 = sshll.u32 [#allocation5], 4
      %s216 = int_to_ptr.vmem [resolvable:$true] %s215
      %218 = dma.vmem_to_hbm [thread:$0]  %s216, 32, %s1, [#allocation4]
    $region17: #{tpu_custom_call.1} parent=1 // pred_fallthru
      _
    // Predicated region
    $region18: #{tpu_custom_call.1} parent=1 // pred_check
      _
    $region19: #{tpu_custom_call.1} parent=1 // pred_check_branch
      %220 = sbr.rel (0) target = $region21
    $region20: #{tpu_custom_call.1} parent=1 // pred_region
      %s222 = ssub.s32 32, 32
      %223 = vsyncadd [#allocation7], %s222
      %s225 = sshll.u32 [#allocation6], 4
      %s226 = int_to_ptr.vmem [resolvable:$true] %s225
      %228 = dma.vmem_to_hbm [thread:$0]  %s226, 32, %s2, [#allocation7]
    $region21: #{tpu_custom_call.1} parent=1 // pred_fallthru
      _
    // Predicated region
    $region22: #{tpu_custom_call.1} parent=1 // pred_check
      _
    $region23: #{tpu_custom_call.1} parent=1 // pred_check_branch
      %230 = sbr.rel (0) target = $region25
    $region24: #{tpu_custom_call.1} parent=1 // pred_region
      %231 = dma.done [#allocation4], 32
    $region25: #{tpu_custom_call.1} parent=1 // pred_fallthru
      _
    // Predicated region
    $region26: #{tpu_custom_call.1} parent=1 // pred_check
      _
    $region27: #{tpu_custom_call.1} parent=1 // pred_check_branch
      %233 = sbr.rel (0) target = $region29
    $region28: #{tpu_custom_call.1} parent=1 // pred_region
      %234 = dma.done [#allocation7], 32
    $region29: #{tpu_custom_call.1} parent=1 // pred_fallthru
      _
    %235 = vsyncpa [#allocation3], 1
    %236 = vsyncpa [#allocation4], 1
    %237 = vsyncpa [#allocation7], 1

</llo_original>
